<compile_context>
chip_gen: v7x
topology: tpu7x:2x2x1
jax: 0.10.0
libtpu: 0.0.40
codegen_flags: <defaults>
</compile_context>

<pallas_src>
import jax
import jax.numpy as jnp
from jax.experimental import pallas as pl
from jax.experimental.pallas import tpu as pltpu

LN_EPS = 1e-5


# --------------------------------------------------------------------------- #
# VMEM budgeting
# --------------------------------------------------------------------------- #
def _vmem_budget():
    """Generation-aware scoped-VMEM limit and tile-sizing budget."""
    phys = 64 * 1024 * 1024                       # conservative default (v7x per-TC)
    try:
        info = pltpu.get_tpu_info()
        phys = int(getattr(info, "vmem_capacity_bytes", phys))
    except Exception:
        pass
    limit = phys * 3 // 4                         # ~96 MiB v5e/v6e, ~48 MiB v7x
    budget = limit * 4 // 5                       # headroom for compiler temporaries
    return int(limit), int(budget)


def _fused_batch_tile(B, S, D, budget, x_bytes):
    """Largest batch tile tb such that the fused (tb, S, D) step fits VMEM.

    Returns None when even tb == 1 does not fit (caller falls back to two-pass).
    """
    def step_bytes(tb):
        xio = tb * S * D * x_bytes
        return (2 * xio + 2 * xio                 # x + out, double-buffered
                + 2 * S * S * 4                   # W: inputs are double-buffered
                + 2 * S * D * 4                   # base (beta*rowsumW + b)
                + 2 * D * 4                       # gamma
                + 4 * S * D * 4)                  # per-row f32 temporaries (xt, cen, m, v)

    tb = None
    for c in (8, 4, 2, 1):
        if B % c == 0 and step_bytes(c) <= budget:
            tb = c
            break
    if tb is None:
        return None
    # Keep >= 2 blocks on the (only, parallel) grid axis so megacore can shard.
    while tb > 1 and B // tb < 2:
        tb //= 2
    return tb


def _choose_tiles(B, S, D, budget, x_bytes):
    """(batch_tile, d_tile) for the two-pass fallback."""
    w_bytes = 2 * S * S * 4                       # W is double-buffered by the pipeline

    def step_bytes(tb, td):
        tile = tb * S * td * x_bytes
        return (4 * tile                          # x + out, double-buffered
                + w_bytes
                + 8 * tb * S * 4                  # mean/rstd blocks + scratch
                + 2 * S * td * 4                  # base tile
                + 2 * td * 4                      # gamma tile
                + 3 * tb * S * td * 4)            # f32 temporaries (xhat, m, v)

    td_cands = [c for c in (1024, 512, 256, 128) if D % c == 0]
    td = None
    for c in td_cands:
        if step_bytes(1, c) <= budget:
            td = c
            break
    if td is None:
        td = td_cands[-1] if td_cands else D      # best effort (small D or huge S)
    tb = 1
    for c in (8, 4, 2):
        if B % c == 0 and step_bytes(c, td) <= budget:
            tb = c
            break
    # >= 2 blocks on the *parallel* (batch) axis when possible (megacore / 2 TCs).
    while tb > 1 and B // tb < 2:
        tb //= 2
    return tb, td


# --------------------------------------------------------------------------- #
# Fused single-pass kernel (primary path)
# --------------------------------------------------------------------------- #
def _make_fused_kernel(tb, matmul_dtype):
    def _fused_kernel(x_ref, gamma_ref, w_ref, base_ref, o_ref):
        # W / gamma / base have constant block indices -> fetched once, resident.
        w = w_ref[...].astype(jnp.float32)                       # (S, S)
        if matmul_dtype is not None:
            w = w.astype(matmul_dtype)
        gamma = gamma_ref[...].astype(jnp.float32)               # (1, D)
        base = base_ref[...].astype(jnp.float32)                 # (S, D)

        # Static unroll over the batch tile: W stays on the MXU across rows.
        for t in range(tb):
            xt = x_ref[t].astype(jnp.float32)                    # (S, D)
            # Two-pass (numerically stable) LayerNorm statistics on resident data.
            mean = jnp.mean(xt, axis=-1, keepdims=True)          # (S, 1)
            cen = xt - mean
            var = jnp.mean(cen * cen, axis=-1, keepdims=True)
            xhat = cen * jax.lax.rsqrt(var + LN_EPS)             # (S, D)
            if matmul_dtype is not None:
                xhat = xhat.astype(matmul_dtype)
            # Linear over seq: gamma/beta/bias folded around the matmul:
            #   v = gamma * (W @ xhat) + (beta * rowsum(W) + b)
            m = jnp.dot(w, xhat, preferred_element_type=jnp.float32)
            v = gamma * m + base
            o_ref[t] = (xt * v).astype(o_ref.dtype)

    return _fused_kernel


# --------------------------------------------------------------------------- #
# Two-pass fallback (only when a (1, S, D) slice does not fit the VMEM budget)
# --------------------------------------------------------------------------- #
def _make_stats_kernel(d_ffn):
    inv_d = 1.0 / float(d_ffn)

    # Note: single-pass E[x^2] - mean^2 accumulation over D tiles; acceptable for
    # the fallback (huge D). The primary fused path uses the stable two-pass form.
    def _stats_kernel(x_ref, mean_ref, rstd_ref, sum_sc, sq_sc):
        k = pl.program_id(1)

        @pl.when(k == 0)
        def _():
            sum_sc[...] = jnp.zeros_like(sum_sc)
            sq_sc[...] = jnp.zeros_like(sq_sc)

        x = x_ref[...].astype(jnp.float32)                       # (TB, S, TD)
        sum_sc[...] += jnp.sum(x, axis=-1, keepdims=True)
        sq_sc[...] += jnp.sum(x * x, axis=-1, keepdims=True)

        @pl.when(k == pl.num_programs(1) - 1)
        def _():
            mean = sum_sc[...] * inv_d
            var = sq_sc[...] * inv_d - mean * mean               # biased (torch LN)
            mean_ref[...] = mean
            rstd_ref[...] = jax.lax.rsqrt(var + LN_EPS)

    return _stats_kernel


def _make_gating_kernel(tb, matmul_dtype):
    def _gating_kernel(x_ref, mean_ref, rstd_ref, gamma_ref, w_ref, base_ref, o_ref):
        w = w_ref[...].astype(jnp.float32)                       # (S, S), resident
        if matmul_dtype is not None:
            w = w.astype(matmul_dtype)
        gamma = gamma_ref[...].astype(jnp.float32)               # (1, TD)
        base = base_ref[...].astype(jnp.float32)                 # (S, TD)

        for t in range(tb):
            xt = x_ref[t].astype(jnp.float32)                    # (S, TD)
            xhat = (xt - mean_ref[t]) * rstd_ref[t]
            if matmul_dtype is not None:
                xhat = xhat.astype(matmul_dtype)
            m = jnp.dot(w, xhat, preferred_element_type=jnp.float32)
            o_ref[t] = (xt * (gamma * m + base)).astype(o_ref.dtype)

    return _gating_kernel


# --------------------------------------------------------------------------- #
# Wrapper
# --------------------------------------------------------------------------- #
def channel_domain_gating(x, gamma, beta, w, b, *, matmul_dtype=None,
                          force_two_pass=False):
    """x: (B, S, D). gamma/beta: (D,). w: (S, S). b: (S,).

    matmul_dtype: optionally jnp.bfloat16 to feed the MXU bf16 (f32 accumulation);
    off by default to match the f32 reference.
    """
    B, S, D = x.shape
    x_bytes = x.dtype.itemsize
    vmem_limit, budget = _vmem_budget()

    # Fold beta / Linear bias around the matmul:
    #   base[s, d] = beta[d] * rowsum(W)[s] + b[s]
    rowsum_w = jnp.sum(w.astype(jnp.float32), axis=1, keepdims=True)        # (S, 1)
    base = beta.astype(jnp.float32).reshape(1, D) * rowsum_w \
        + b.astype(jnp.float32).reshape(S, 1)                               # (S, D)
    gamma2 = gamma.reshape(1, D)

    # ---------------- fused single-pass path (one HBM read of x) -----------
    tb_fused = None if force_two_pass else _fused_batch_tile(B, S, D, budget, x_bytes)
    if tb_fused is not None:
        bt = B // tb_fused
        return pl.pallas_call(
            _make_fused_kernel(tb_fused, matmul_dtype),
            out_shape=jax.ShapeDtypeStruct((B, S, D), x.dtype),
            grid_spec=pltpu.PrefetchScalarGridSpec(
                num_scalar_prefetch=0,
                grid=(bt,),
                in_specs=[
                    pl.BlockSpec((tb_fused, S, D), lambda bi: (bi, 0, 0)),  # x
                    pl.BlockSpec((1, D), lambda bi: (0, 0)),                # gamma
                    pl.BlockSpec((S, S), lambda bi: (0, 0)),                # W (resident)
                    pl.BlockSpec((S, D), lambda bi: (0, 0)),                # base (resident)
                ],
                out_specs=pl.BlockSpec((tb_fused, S, D), lambda bi: (bi, 0, 0)),
            ),
            compiler_params=pltpu.CompilerParams(
                dimension_semantics=("parallel",),
                vmem_limit_bytes=vmem_limit),
            cost_estimate=pl.CostEstimate(
                flops=2 * B * S * S * D + 8 * B * S * D,
                transcendentals=B * S,
                bytes_accessed=2 * B * S * D * x_bytes + S * S * 4 + S * D * 4 + D * 4),
        )(x, gamma2, w, base)

    # ---------------- two-pass D-tiled fallback -----------------------------
    tb, td = _choose_tiles(B, S, D, budget, x_bytes)
    kd = D // td
    bt = B // tb

    mean, rstd = pl.pallas_call(
        _make_stats_kernel(D),
        out_shape=(jax.ShapeDtypeStruct((B, S, 1), jnp.float32),
                   jax.ShapeDtypeStruct((B, S, 1), jnp.float32)),
        grid_spec=pltpu.PrefetchScalarGridSpec(
            num_scalar_prefetch=0,
            grid=(bt, kd),                                       # D axis is the reduction
            in_specs=[pl.BlockSpec((tb, S, td), lambda bi, ki: (bi, 0, ki))],
            out_specs=[pl.BlockSpec((tb, S, 1), lambda bi, ki: (bi, 0, 0)),
                       pl.BlockSpec((tb, S, 1), lambda bi, ki: (bi, 0, 0))],
            scratch_shapes=[pltpu.VMEM((tb, S, 1), jnp.float32),
                            pltpu.VMEM((tb, S, 1), jnp.float32)],
        ),
        compiler_params=pltpu.CompilerParams(
            dimension_semantics=("parallel", "arbitrary"),
            vmem_limit_bytes=vmem_limit),
        cost_estimate=pl.CostEstimate(
            flops=3 * B * S * D,
            transcendentals=B * S,
            bytes_accessed=B * S * D * x_bytes + 2 * B * S * 4),
    )(x)

    out = pl.pallas_call(
        _make_gating_kernel(tb, matmul_dtype),
        out_shape=jax.ShapeDtypeStruct((B, S, D), x.dtype),
        grid_spec=pltpu.PrefetchScalarGridSpec(
            num_scalar_prefetch=0,
            grid=(bt, kd),
            in_specs=[
                pl.BlockSpec((tb, S, td), lambda bi, ki: (bi, 0, ki)),      # x
                pl.BlockSpec((tb, S, 1), lambda bi, ki: (bi, 0, 0)),        # mean
                pl.BlockSpec((tb, S, 1), lambda bi, ki: (bi, 0, 0)),        # rstd
                pl.BlockSpec((1, td), lambda bi, ki: (0, ki)),              # gamma
                pl.BlockSpec((S, S), lambda bi, ki: (0, 0)),                # W (resident)
                pl.BlockSpec((S, td), lambda bi, ki: (0, ki)),              # base
            ],
            out_specs=pl.BlockSpec((tb, S, td), lambda bi, ki: (bi, 0, ki)),
        ),
        compiler_params=pltpu.CompilerParams(
            dimension_semantics=("parallel", "parallel"),
            vmem_limit_bytes=vmem_limit),
        cost_estimate=pl.CostEstimate(
            flops=2 * B * S * S * D + 6 * B * S * D,
            transcendentals=0,
            bytes_accessed=2 * B * S * D * x_bytes + S * S * 4 + S * D * 4
                           + 2 * B * S * 4),
    )(x, mean, rstd, gamma2, w, base)
    return out


# --------------------------------------------------------------------------- #
# Reference & test
# --------------------------------------------------------------------------- #
def _reference(x, gamma, beta, w, b):
    mean = jnp.mean(x, axis=-1, keepdims=True)
    var = jnp.mean((x - mean) ** 2, axis=-1, keepdims=True)
    vn = (x - mean) / jnp.sqrt(var + LN_EPS) * gamma + beta     # (B, S, D)
    vp = jnp.transpose(vn, (0, 2, 1))                           # (B, D, S)
    vp = vp @ w.T + b                                           # (B, D, S)
    v = jnp.transpose(vp, (0, 2, 1))                            # (B, S, D)
    return x * v


if __name__ == "__main__":
    def run_case(B, S, D, force_two_pass):
        key = jax.random.PRNGKey(0)
        kx, kw, kb, kg, kbe = jax.random.split(key, 5)
        x = jax.random.normal(kx, (B, S, D), dtype=jnp.float32)
        # Learnable params (non-trivial gamma/beta to exercise the folded-affine path).
        gamma = 1.0 + 0.1 * jax.random.normal(kg, (D,), dtype=jnp.float32)
        beta = 0.1 * jax.random.normal(kbe, (D,), dtype=jnp.float32)
        bound = 1.0 / float(S) ** 0.5
        w = jax.random.uniform(kw, (S, S), minval=-bound, maxval=bound,
                               dtype=jnp.float32)               # nn.Linear(S, S) weight
        b = jax.random.uniform(kb, (S,), minval=-bound, maxval=bound,
                               dtype=jnp.float32)               # nn.Linear bias

        out = channel_domain_gating(x, gamma, beta, w, b,
                                    force_two_pass=force_two_pass)
        out = jax.block_until_ready(out)
        ref = _reference(x, gamma, beta, w, b)
        assert out.shape == (B, S, D)
        assert jnp.allclose(out, ref, atol=1e-5, rtol=1e-5), (
            f"mismatch vs reference (B={B}, S={S}, D={D}, two_pass={force_two_pass})")

    # Primary fused path at the module's small example shape (batch=2, seq=8, d_ffn=32).
    run_case(B=2, S=8, D=32, force_two_pass=False)
    # Fused path with multiple batch rows per grid step.
    run_case(B=8, S=8, D=32, force_two_pass=False)
    # Two-pass D-tiled fallback (used when a (tb, S, D) slice does not fit VMEM).
    run_case(B=2, S=8, D=32, force_two_pass=True)
    run_case(B=8, S=8, D=32, force_two_pass=True)

    print("KERNEL_OK")
</pallas_src>

<mosaic_0001>
module attributes {stable_mosaic.version = 11 : i64} {
  func.func @_fused_kernel(%arg0: i32, %arg1: memref<1x8x32xf32, #tpu.memory_space<vmem>>, %arg2: memref<1x32xf32, #tpu.memory_space<vmem>>, %arg3: memref<8x8xf32, #tpu.memory_space<vmem>>, %arg4: memref<8x32xf32, #tpu.memory_space<vmem>>, %arg5: memref<1x8x32xf32, #tpu.memory_space<vmem>>) attributes {dimension_semantics = [#tpu.dimension_semantics<parallel>], iteration_bounds = array<i64: 2>, scalar_prefetch = 0 : i64, scratch_operands = 0 : i64, tpu.core_type = #tpu.core_type<tc>, window_params = [{transform_indices = @transform_0, window_bounds = array<i64: 1, 8, 32>}, {pipeline_mode = #tpu.pipeline_mode<synchronous>, transform_indices = @transform_1, window_bounds = array<i64: 1, 32>}, {pipeline_mode = #tpu.pipeline_mode<synchronous>, transform_indices = @transform_2, window_bounds = array<i64: 8, 8>}, {pipeline_mode = #tpu.pipeline_mode<synchronous>, transform_indices = @transform_3, window_bounds = array<i64: 8, 32>}, {transform_indices = @transform_4, window_bounds = array<i64: 1, 8, 32>}]} {
    %c0 = arith.constant 0 : index
    %c0_0 = arith.constant 0 : index
    %0 = vector.load %arg3[%c0, %c0_0] : memref<8x8xf32, #tpu.memory_space<vmem>>, vector<8x8xf32>
    %c0_1 = arith.constant 0 : index
    %c0_2 = arith.constant 0 : index
    %1 = vector.load %arg2[%c0_1, %c0_2] : memref<1x32xf32, #tpu.memory_space<vmem>>, vector<1x32xf32>
    %c0_3 = arith.constant 0 : index
    %c0_4 = arith.constant 0 : index
    %2 = vector.load %arg4[%c0_3, %c0_4] : memref<8x32xf32, #tpu.memory_space<vmem>>, vector<8x32xf32>
    %c0_5 = arith.constant 0 : index
    %c0_6 = arith.constant 0 : index
    %c0_7 = arith.constant 0 : index
    %3 = vector.load %arg1[%c0_5, %c0_6, %c0_7] : memref<1x8x32xf32, #tpu.memory_space<vmem>>, vector<1x8x32xf32>
    %4 = vector.shape_cast %3 : vector<1x8x32xf32> to vector<8x32xf32>
    %cst = arith.constant dense<0.000000e+00> : vector<8xf32>
    %5 = vector.multi_reduction <add>, %4, %cst [1] : vector<8x32xf32> to vector<8xf32>
    %6 = vector.shape_cast %5 : vector<8xf32> to vector<8x1xf32>
    %cst_8 = arith.constant 3.200000e+01 : f32
    %7 = vector.broadcast %cst_8 : f32 to vector<8x1xf32>
    %8 = arith.divf %6, %7 : vector<8x1xf32>
    %9 = vector.broadcast %8 : vector<8x1xf32> to vector<8x32xf32>
    %10 = arith.subf %4, %9 : vector<8x32xf32>
    %11 = arith.mulf %10, %10 : vector<8x32xf32>
    %cst_9 = arith.constant dense<0.000000e+00> : vector<8xf32>
    %12 = vector.multi_reduction <add>, %11, %cst_9 [1] : vector<8x32xf32> to vector<8xf32>
    %13 = vector.shape_cast %12 : vector<8xf32> to vector<8x1xf32>
    %cst_10 = arith.constant 3.200000e+01 : f32
    %14 = vector.broadcast %cst_10 : f32 to vector<8x1xf32>
    %15 = arith.divf %13, %14 : vector<8x1xf32>
    %cst_11 = arith.constant 9.99999974E-6 : f32
    %16 = vector.broadcast %cst_11 : f32 to vector<8x1xf32>
    %17 = arith.addf %15, %16 : vector<8x1xf32>
    %18 = math.rsqrt %17 : vector<8x1xf32>
    %19 = vector.broadcast %18 : vector<8x1xf32> to vector<8x32xf32>
    %20 = arith.mulf %10, %19 : vector<8x32xf32>
    %cst_12 = arith.constant dense<0.000000e+00> : vector<8x32xf32>
    %21 = tpu.matmul %0, %20, %cst_12 {dimension_numbers = #tpu.dot_dimension_numbers<[1], [0], [0], [1], [0, 0, 1, 1], [], []>} : vector<8x8xf32>, vector<8x32xf32>, vector<8x32xf32> -> vector<8x32xf32>
    %22 = vector.broadcast %1 : vector<1x32xf32> to vector<8x32xf32>
    %23 = arith.mulf %22, %21 : vector<8x32xf32>
    %24 = arith.addf %23, %2 : vector<8x32xf32>
    %25 = arith.mulf %4, %24 : vector<8x32xf32>
    %c0_13 = arith.constant 0 : index
    %c0_14 = arith.constant 0 : index
    %c0_15 = arith.constant 0 : index
    %26 = vector.load %arg5[%c0_13, %c0_14, %c0_15] : memref<1x8x32xf32, #tpu.memory_space<vmem>>, vector<1x8x32xf32>
    %27 = vector.shape_cast %26 : vector<1x8x32xf32> to vector<8x32xf32>
    %28 = vector.shape_cast %25 : vector<8x32xf32> to vector<1x8x32xf32>
    tpu.vector_store %arg5[%c0_13, %c0_14, %c0_15], %28 {strides = array<i32>} : memref<1x8x32xf32, #tpu.memory_space<vmem>>, vector<1x8x32xf32>,
    return
  }
  func.func @transform_0(%arg0: i32) -> (i32, i32, i32) {
    %c0_i32 = arith.constant 0 : i32
    %c0_i32_0 = arith.constant 0 : i32
    %c0_i32_1 = arith.constant 0 : i32
    return %arg0, %c0_i32, %c0_i32_0 : i32, i32, i32
  }
  func.func @transform_1(%arg0: i32) -> (i32, i32) {
    %c0_i32 = arith.constant 0 : i32
    %c0_i32_0 = arith.constant 0 : i32
    %c0_i32_1 = arith.constant 0 : i32
    return %c0_i32, %c0_i32_0 : i32, i32
  }
  func.func @transform_2(%arg0: i32) -> (i32, i32) {
    %c0_i32 = arith.constant 0 : i32
    %c0_i32_0 = arith.constant 0 : i32
    %c0_i32_1 = arith.constant 0 : i32
    return %c0_i32, %c0_i32_0 : i32, i32
  }
  func.func @transform_3(%arg0: i32) -> (i32, i32) {
    %c0_i32 = arith.constant 0 : i32
    %c0_i32_0 = arith.constant 0 : i32
    %c0_i32_1 = arith.constant 0 : i32
    return %c0_i32, %c0_i32_0 : i32, i32
  }
  func.func @transform_4(%arg0: i32) -> (i32, i32, i32) {
    %c0_i32 = arith.constant 0 : i32
    %c0_i32_0 = arith.constant 0 : i32
    %c0_i32_1 = arith.constant 0 : i32
    return %arg0, %c0_i32, %c0_i32_0 : i32, i32, i32
  }
}

</mosaic_0001>

<llo_original>
// kernel: tpu_custom_call.1
$region0: #{tpu_custom_call.1}
  #allocation0 [shape = 'u32[]', space=smem, size = 0x4, offset = 0x4, fixed_abs, tag = 'smem constant byte address 0x4 - core index']
  #allocation1 [shape = 'u32[144,128]{1,0:T(1,128)}', space=vmem, size = 0x12000, scoped, tag = 'internal scratch']
  %s0 = inlined_call_operand.hbm [shape: f32[2,8,32], index: 0, kind: input, shape index: {}]
  %s1 = inlined_call_operand.vmem [shape: f32[1,32], index: 1, kind: input, shape index: {}]
  %s2 = inlined_call_operand.hbm [shape: f32[8,8], index: 2, kind: input, shape index: {}]
  %s3 = inlined_call_operand.vmem [shape: f32[8,32], index: 3, kind: input, shape index: {}]
  %s4 = inlined_call_operand.hbm [shape: f32[2,8,32], index: 4, kind: output, shape index: {}]
  %s5 = sld [smem:[#allocation0]]
  $region57: #{tpu_custom_call.1} parent=0
    _
  %s7 = ssub.s32 1, %s5
  %s8 = scalar_select 0, %s7, %s5
  $region1: #{tpu_custom_call.1} parent=0
    #allocation2 [shape = 'u8[8192]{0}', space=vmem, size = 0x2000, scoped, tag = 'input window, operand 0']
    #allocation3 [shape = 's32[2]{0}', space=sflag, size = 0x8, scoped, tag = 'scoped memory for tpu_custom_call.1']
    #allocation4 [shape = 's32[2]{0}', space=sflag, size = 0x8, scoped, tag = 'scoped memory for tpu_custom_call.1']
    #allocation5 [shape = 'u8[4096]{0}', space=vmem, size = 0x1000, scoped, tag = 'input window, operand 2, single buffered']
    #allocation6 [shape = 's32[1]{0}', space=sflag, size = 0x4, scoped, tag = 'scoped memory for tpu_custom_call.1']
    #allocation7 [shape = 'u8[8192]{0}', space=vmem, size = 0x2000, scoped, tag = 'output window, operand 0']
    %9 = vsyncpa [#allocation3], 0
    %s10 = scalar_lea.sflag [#allocation3], 1
    %11 = vsyncpa %s10, 0
    %12 = vsyncpa [#allocation6], 0
    %13 = vsyncpa [#allocation4], 0
    %s14 = scalar_lea.sflag [#allocation4], 1
    %15 = vsyncpa %s14, 0
    loop: start=0, step=1, limit=4
    $region2: #{tpu_custom_call.1} parent=1 // loop_pre_header
      _
    $region3: #{tpu_custom_call.1} parent=1 // loop_header
      %s17 = sphi 0, %s21
      %p18 = scmp.ge.s32.totalorder %s17, 4
      %s27 = sphi 0, %s29
      %s30 = sphi 0, %s27
      %s31 = sphi 0, %s30
      %s47 = sphi 0, %s31
      %s51 = sphi 0, %s51
      %s53 = sphi 0, %s51
      %s54 = sphi 0, %s53
      %s68 = sphi 0, %s54
      %s72 = sphi 0, %s72
      %s74 = sphi 0, %s72
      %s75 = sphi 0, %s74
      %s89 = sphi 0, %s75
      %s93 = sphi 0, %s93
      %s95 = sphi 0, %s93
      %s96 = sphi 0, %s95
      %s110 = sphi 0, %s96
      %s116 = sphi 0, %s118
      %s119 = sphi 0, %s116
      %s120 = sphi 0, %s119
      %s136 = sphi 0, %s120
    $region4: #{tpu_custom_call.1} parent=1 // loop_header_branch
      %20 = sbr.rel (%p18) target = $region8
    $region5: #{tpu_custom_call.1} parent=1 // loop_body
      %s22 = ssub.s32 %s17, 1
      %s23 = ssub.s32 %s17, 2
      %s24 = sadd.s32 %s17, 1
      %s25 = ssub.s32 %s17, %s24
      %p26 = scmp.eq.s32.totalorder %s25, 0
      %s28 = sadd.s32 %s27, 1
      %s29 = scalar_select %p26, %s27, %s28
      %p32 = pneg %p26
      %p33 = scmp.eq.s32.totalorder %s17, 1
      %p34 = por %p32, %p33
      %p35 = scmp.ne.s32.totalorder %s27, %s30
      %p36 = scmp.eq.s32.totalorder %s17, 0
      %p37 = por %p35, %p36
      %p38 = scmp.ne.s32.totalorder %s27, %s30
      %p39 = scmp.eq.s32.totalorder %s22, 1
      %p40 = por %p38, %p39
      %p41 = scmp.ne.s32.totalorder %s30, %s31
      %p42 = scmp.eq.s32.totalorder %s22, 0
      %p43 = por %p41, %p42
      %p44 = scmp.ne.s32.totalorder %s30, %s31
      %p45 = scmp.eq.s32.totalorder %s23, 1
      %p46 = por %p44, %p45
      %p48 = scmp.ne.s32.totalorder %s31, %s47
      %p49 = scmp.eq.s32.totalorder %s23, 0
      %p50 = por %p48, %p49
      %s52 = sadd.s32 %s51, 1
      %p55 = scmp.eq.s32.totalorder %s17, 1
      %p56 = scmp.ne.s32.totalorder %s51, %s53
      %p57 = scmp.eq.s32.totalorder %s17, 0
      %p58 = por %p56, %p57
      %p59 = scmp.ne.s32.totalorder %s51, %s53
      %p60 = scmp.eq.s32.totalorder %s22, 1
      %p61 = por %p59, %p60
      %p62 = scmp.ne.s32.totalorder %s53, %s54
      %p63 = scmp.eq.s32.totalorder %s22, 0
      %p64 = por %p62, %p63
      %p65 = scmp.ne.s32.totalorder %s53, %s54
      %p66 = scmp.eq.s32.totalorder %s23, 1
      %p67 = por %p65, %p66
      %p69 = scmp.ne.s32.totalorder %s54, %s68
      %p70 = scmp.eq.s32.totalorder %s23, 0
      %p71 = por %p69, %p70
      %s73 = sadd.s32 %s72, 1
      %p76 = scmp.eq.s32.totalorder %s17, 1
      %p77 = scmp.ne.s32.totalorder %s72, %s74
      %p78 = scmp.eq.s32.totalorder %s17, 0
      %p79 = por %p77, %p78
      %p80 = scmp.ne.s32.totalorder %s72, %s74
      %p81 = scmp.eq.s32.totalorder %s22, 1
      %p82 = por %p80, %p81
      %p83 = scmp.ne.s32.totalorder %s74, %s75
      %p84 = scmp.eq.s32.totalorder %s22, 0
      %p85 = por %p83, %p84
      %p86 = scmp.ne.s32.totalorder %s74, %s75
      %p87 = scmp.eq.s32.totalorder %s23, 1
      %p88 = por %p86, %p87
      %p90 = scmp.ne.s32.totalorder %s75, %s89
      %p91 = scmp.eq.s32.totalorder %s23, 0
      %p92 = por %p90, %p91
      %s94 = sadd.s32 %s93, 1
      %p97 = scmp.eq.s32.totalorder %s17, 1
      %p98 = scmp.ne.s32.totalorder %s93, %s95
      %p99 = scmp.eq.s32.totalorder %s17, 0
      %p100 = por %p98, %p99
      %p101 = scmp.ne.s32.totalorder %s93, %s95
      %p102 = scmp.eq.s32.totalorder %s22, 1
      %p103 = por %p101, %p102
      %p104 = scmp.ne.s32.totalorder %s95, %s96
      %p105 = scmp.eq.s32.totalorder %s22, 0
      %p106 = por %p104, %p105
      %p107 = scmp.ne.s32.totalorder %s95, %s96
      %p108 = scmp.eq.s32.totalorder %s23, 1
      %p109 = por %p107, %p108
      %p111 = scmp.ne.s32.totalorder %s96, %s110
      %p112 = scmp.eq.s32.totalorder %s23, 0
      %p113 = por %p111, %p112
      %s114 = ssub.s32 %s17, %s24
      %p115 = scmp.eq.s32.totalorder %s114, 0
      %s117 = sadd.s32 %s116, 1
      %s118 = scalar_select %p115, %s116, %s117
      %p121 = pneg %p115
      %p122 = scmp.eq.s32.totalorder %s17, 1
      %p123 = por %p121, %p122
      %p124 = scmp.ne.s32.totalorder %s116, %s119
      %p125 = scmp.eq.s32.totalorder %s17, 0
      %p126 = por %p124, %p125
      %p127 = scmp.ne.s32.totalorder %s116, %s119
      %p128 = scmp.eq.s32.totalorder %s22, 1
      %p129 = por %p127, %p128
      %p130 = scmp.ne.s32.totalorder %s119, %s120
      %p131 = scmp.eq.s32.totalorder %s22, 0
      %p132 = por %p130, %p131
      %p133 = scmp.ne.s32.totalorder %s119, %s120
      %p134 = scmp.eq.s32.totalorder %s23, 1
      %p135 = por %p133, %p134
      %p137 = scmp.ne.s32.totalorder %s120, %s136
      %p138 = scmp.eq.s32.totalorder %s23, 0
      %p139 = por %p137, %p138
      %p140 = scmp.le.s32.totalorder 1, %s17
      %p141 = scmp.lt.s32.totalorder %s17, 3
      %p142 = pnand %p140, %p141
      %p143 = pneg %p142
      // Predicated region
      $region9: #{tpu_custom_call.1} parent=5 // pred_check
        _
      $region10: #{tpu_custom_call.1} parent=5 // pred_check_branch
        %145 = sbr.rel (%p142) target = $region12
      $region11: #{tpu_custom_call.1} parent=5 // pred_region
        %s146 = ssub.s32 %s17, 1
        // Predicated region
        $region13: #{tpu_custom_call.1} parent=11 // pred_check
          %p147 = pneg %p64
        $region14: #{tpu_custom_call.1} parent=11 // pred_check_branch
          %149 = sbr.rel (%p147) target = $region16
        $region15: #{tpu_custom_call.1} parent=11 // pred_region
          _
        $region16: #{tpu_custom_call.1} parent=11 // pred_fallthru
          _
        // Predicated region
        $region17: #{tpu_custom_call.1} parent=11 // pred_check
          %p150 = pneg %p85
        $region18: #{tpu_custom_call.1} parent=11 // pred_check_branch
          %152 = sbr.rel (%p150) target = $region20
        $region19: #{tpu_custom_call.1} parent=11 // pred_region
          %s154 = ssub.s32 128, 128
          %155 = vsyncadd [#allocation6], %s154
          %s157 = sshll.u32 [#allocation5], 4
          %s158 = int_to_ptr.vmem [resolvable:$true] %s157
          %160 = dma.hbm_to_vmem [thread:$0]  %s2, 128, %s158, [#allocation6]
        $region20: #{tpu_custom_call.1} parent=11 // pred_fallthru
          _
        // Predicated region
        $region21: #{tpu_custom_call.1} parent=11 // pred_check
          %p161 = pneg %p106
        $region22: #{tpu_custom_call.1} parent=11 // pred_check_branch
          %163 = sbr.rel (%p161) target = $region24
        $region23: #{tpu_custom_call.1} parent=11 // pred_region
          _
        $region24: #{tpu_custom_call.1} parent=11 // pred_fallthru
          _
      $region12: #{tpu_custom_call.1} parent=5 // pred_fallthru
        _
      %p164 = scmp.lt.s32.totalorder %s17, 2
      // Predicated region
      $region25: #{tpu_custom_call.1} parent=5 // pred_check
        %p165 = pneg %p164
      $region26: #{tpu_custom_call.1} parent=5 // pred_check_branch
        %167 = sbr.rel (%p165) target = $region28
      $region27: #{tpu_custom_call.1} parent=5 // pred_region
        // Predicated region
        $region29: #{tpu_custom_call.1} parent=27 // pred_check
          %p168 = pneg %p37
        $region30: #{tpu_custom_call.1} parent=27 // pred_check_branch
          %170 = sbr.rel (%p168) target = $region32
        $region31: #{tpu_custom_call.1} parent=27 // pred_region
          %s171 = sand.u32 %s27, 1
          %s172 = scalar_lea.sflag [#allocation3], %s171
          %s173 = sand.u32 %s27, 1
          %s174 = smul.addr %s173, 8
          %s175 = scalar_lea.vmem [#allocation2], %s174
          %s177 = ssub.s32 128, 128
          %178 = vsyncadd %s172, %s177
          %s179 = smul.addr %s17, 128
          %s180 = scalar_lea.hbm %s0, %s179
          %s182 = sshll.u32 %s175, 4
          %s183 = int_to_ptr.vmem [resolvable:$true] %s182
          %185 = dma.hbm_to_vmem [thread:$0]  %s180, 128, %s183, %s172
        $region32: #{tpu_custom_call.1} parent=27 // pred_fallthru
          _
      $region28: #{tpu_custom_call.1} parent=5 // pred_fallthru
        _
      %p186 = scmp.le.s32.totalorder 1, %s17
      %p187 = scmp.lt.s32.totalorder %s17, 3
      %p188 = pnand %p186, %p187
      %p189 = pneg %p188
      // Predicated region
      $region33: #{tpu_custom_call.1} parent=5 // pred_check
        _
      $region34: #{tpu_custom_call.1} parent=5 // pred_check_branch
        %191 = sbr.rel (%p188) target = $region36
      $region35: #{tpu_custom_call.1} parent=5 // pred_region
        %s192 = ssub.s32 %s17, 1
        %s193 = sand.u32 %s30, 1
        %s194 = scalar_lea.sflag [#allocation3], %s193
        %s195 = sand.u32 %s30, 1
        %s196 = smul.addr %s195, 8
        %s197 = scalar_lea.vmem [#allocation2], %s196
        // Predicated region
        $region37: #{tpu_custom_call.1} parent=35 // pred_check
          %p198 = pneg %p43
        $region38: #{tpu_custom_call.1} parent=35 // pred_check_branch
          %200 = sbr.rel (%p198) target = $region40
        $region39: #{tpu_custom_call.1} parent=35 // pred_region
          %201 = dma.done %s194, 128
        $region40: #{tpu_custom_call.1} parent=35 // pred_fallthru
          _
        // Predicated region
        $region41: #{tpu_custom_call.1} parent=35 // pred_check
          %p202 = pneg %p85
        $region42: #{tpu_custom_call.1} parent=35 // pred_check_branch
          %204 = sbr.rel (%p202) target = $region44
        $region43: #{tpu_custom_call.1} parent=35 // pred_region
          %205 = dma.done [#allocation6], 128
        $region44: #{tpu_custom_call.1} parent=35 // pred_fallthru
          _
        %s206 = sand.u32 %s30, 1
        %s207 = scalar_lea.sflag [#allocation3], %s206
        %s208 = sand.u32 %s30, 1
        %s209 = smul.addr %s208, 8
        %s210 = scalar_lea.vmem [#allocation2], %s209
        %p211 = pneg %p43
        %p212 = pneg %p40
        %p213 = pneg %p64
        %p214 = pneg %p61
        %p215 = pneg %p85
        %p216 = pneg %p82
        %p217 = pneg %p106
        %p218 = pneg %p103
        %p219 = pneg %p132
        %p220 = pneg %p129
        %s221 = sand.u32 %s119, 1
        %s222 = scalar_lea.sflag [#allocation4], %s221
        %s223 = sand.u32 %s119, 1
        %s224 = smul.addr %s223, 8
        %s225 = scalar_lea.vmem [#allocation7], %s224
        %v226 = vld [vmem:[#allocation5] sm:$0xff]
        %v227 = vld [vmem:[%s1] sm:$0x1]
        %v228 = vld [vmem:[%s3] sm:$0xff]
        %v229 = vld [vmem:[%s197] sm:$0xff]
        %vm230 = vcmask 261120
        %v231 = vsel %vm230, %v229, 0.0
        %232 = vadd.xlane.f32.xlu0 %v231
        %v233 = vpop.xlane.xlu0 %232
        %v234 = vrcp.pop 32.0
        %v235 = vmul.f32 %v233, %v234
        %v236 = vsub.f32 %v229, %v235
        %v237 = vmul.f32 %v236, %v236
        %v238 = vsel %vm230, %v237, 0.0
        %239 = vadd.xlane.f32.xlu0 %v238
        %v240 = vpop.xlane.xlu0 %239
        %v241 = vmul.f32 %v240, %v234
        %v242 = vadd.f32 %v241, 1e-05
        %v243 = vrsqrt.pop %v242
        %v244 = vmul.f32 %v236, %v243
        %vm245 = vcmask 64512
        %v247 = vsel %vm245, %v226, 0
        %249 = vmatprep.subr.mxu0 0.0
        %250 = vmatpush1.msra.mxu0 %v244
        %251 = vmatprep.subr.mxu0 0.0
        %252 = vmatpush1.msra.mxu0 0.0
        %253 = vmatprep.subr.mxu0 0.0
        %254 = vmatpush1.msra.mxu0 0.0
        %255 = vmatprep.subr.mxu0 0.0
        %256 = vmatpush1.msra.mxu0 0.0
        %257 = vmatprep.subr.mxu0 0.0
        %258 = vmatpush1.msra.mxu0 0.0
        %259 = vmatprep.subr.mxu0 0.0
        %260 = vmatpush1.msra.mxu0 0.0
        %261 = vmatprep.subr.mxu0 0.0
        %262 = vmatpush1.msra.mxu0 0.0
        %263 = vmatprep.subr.mxu0 0.0
        %264 = vmatpush1.msra.mxu0 0.0
        %265 = vmatprep.subr.mxu0 0.0
        %266 = vmatpush1.msra.mxu0 0.0
        %267 = vmatprep.subr.mxu0 0.0
        %268 = vmatpush1.msra.mxu0 0.0
        %269 = vmatprep.subr.mxu0 0.0
        %270 = vmatpush1.msra.mxu0 0.0
        %271 = vmatprep.subr.mxu0 0.0
        %272 = vmatpush1.msra.mxu0 0.0
        %273 = vmatprep.subr.mxu0 0.0
        %274 = vmatpush1.msra.mxu0 0.0
        %275 = vmatprep.subr.mxu0 0.0
        %276 = vmatpush1.msra.mxu0 0.0
        %277 = vmatprep.subr.mxu0 0.0
        %278 = vmatpush1.msra.mxu0 0.0
        %279 = vmatprep.subr.mxu0 0.0
        %280 = vmatpush1.msra.mxu0 0.0
        %281 = vmatprep.subr.mxu0 0.0
        %282 = vmatpush1.msra.mxu0 0.0
        %283 = vmatprep.subr.mxu0 0.0
        %284 = vmatpush1.msra.mxu0 0.0
        %285 = vmatprep.subr.mxu0 0.0
        %286 = vmatpush1.msra.mxu0 0.0
        %287 = vmatprep.subr.mxu0 0.0
        %288 = vmatpush1.msra.mxu0 0.0
        %289 = vmatprep.subr.mxu0 0.0
        %290 = vmatpush1.msra.mxu0 0.0
        %291 = vmatprep.subr.mxu0 0.0
        %292 = vmatpush1.msra.mxu0 0.0
        %293 = vmatprep.subr.mxu0 0.0
        %294 = vmatpush1.msra.mxu0 0.0
        %295 = vmatprep.subr.mxu0 0.0
        %296 = vmatpush1.msra.mxu0 0.0
        %297 = vmatprep.subr.mxu0 0.0
        %298 = vmatpush1.msra.mxu0 0.0
        %299 = vmatprep.subr.mxu0 0.0
        %300 = vmatpush1.msra.mxu0 0.0
        %301 = vmatprep.subr.mxu0 0.0
        %302 = vmatpush1.msra.mxu0 0.0
        %303 = vmatprep.subr.mxu0 0.0
        %304 = vmatpush1.msra.mxu0 0.0
        %305 = vmatprep.subr.mxu0 0.0
        %306 = vmatpush1.msra.mxu0 0.0
        %307 = vmatprep.subr.mxu0 0.0
        %308 = vmatpush1.msra.mxu0 0.0
        %309 = vmatprep.subr.mxu0 0.0
        %310 = vmatpush1.msra.mxu0 0.0
        %311 = vmatprep.subr.mxu0 0.0
        %312 = vmatpush1.msra.mxu0 0.0
        %313 = vmatprep.mubr.f32.mxu0 0.0
        %314 = vmatmul.mubr.f32.gmra.mrb[0].mxu0 %v247
        %v315 = vpop.f32.mrb[0].mxu0
        %v316 = vadd.f32 0.0, %v315
        %v317 = vpop.f32.mrb[0].mxu0
        %318 = vdwg.mxu0
        %v320 = vlaneseq
        %v321 = vshrl.u32 %v320, 7
        %v322 = vsub.s32 0, %v321
        %v323 = vrot.slane %v227, %v322
        %v325 = vmul.f32 %v323, %v316
        %v326 = vadd.f32 %v325, %v228
        %v327 = vmul.f32 %v229, %v326
        %328 = vst.msk [vmem:[%s225] sm:$0xff] %vm230, %v327
        %s329 = sand.u32 %s119, 1
        %s330 = scalar_lea.sflag [#allocation4], %s329
        %s331 = sand.u32 %s119, 1
        %s332 = smul.addr %s331, 8
        %s333 = scalar_lea.vmem [#allocation7], %s332
        // Predicated region
        $region45: #{tpu_custom_call.1} parent=35 // pred_check
          %p334 = pneg %p129
        $region46: #{tpu_custom_call.1} parent=35 // pred_check_branch
          %336 = sbr.rel (%p334) target = $region48
        $region47: #{tpu_custom_call.1} parent=35 // pred_region
          %s338 = ssub.s32 128, 128
          %339 = vsyncadd %s330, %s338
          %s340 = smul.addr %s22, 128
          %s341 = scalar_lea.hbm %s4, %s340
          %s343 = sshll.u32 %s333, 4
          %s344 = int_to_ptr.vmem [resolvable:$true] %s343
          %346 = dma.vmem_to_hbm [thread:$0]  %s344, 128, %s341, %s330
        $region48: #{tpu_custom_call.1} parent=35 // pred_fallthru
          _
      $region36: #{tpu_custom_call.1} parent=5 // pred_fallthru
        _
      %p347 = scmp.le.s32.totalorder 2, %s17
      // Predicated region
      $region49: #{tpu_custom_call.1} parent=5 // pred_check
        %p348 = pneg %p347
      $region50: #{tpu_custom_call.1} parent=5 // pred_check_branch
        %350 = sbr.rel (%p348) target = $region52
      $region51: #{tpu_custom_call.1} parent=5 // pred_region
        %s351 = ssub.s32 %s17, 2
        // Predicated region
        $region53: #{tpu_custom_call.1} parent=51 // pred_check
          %p352 = pneg %p135
        $region54: #{tpu_custom_call.1} parent=51 // pred_check_branch
          %354 = sbr.rel (%p352) target = $region56
        $region55: #{tpu_custom_call.1} parent=51 // pred_region
          %s355 = sand.u32 %s120, 1
          %s356 = scalar_lea.sflag [#allocation4], %s355
          %s357 = sand.u32 %s120, 1
          %s358 = smul.addr %s357, 8
          %s359 = scalar_lea.vmem [#allocation7], %s358
          %360 = dma.done %s356, 128
        $region56: #{tpu_custom_call.1} parent=51 // pred_fallthru
          _
      $region52: #{tpu_custom_call.1} parent=5 // pred_fallthru
        _
    $region6: #{tpu_custom_call.1} parent=1 // loop_footer
      %s21 = sadd.s32 1, %s17
    $region7: #{tpu_custom_call.1} parent=1 // loop_footer_branch
      %16 = sbr.rel target = $region3
    $region8: #{tpu_custom_call.1} parent=1 // loop_exit
      _
    %361 = vsyncpa [#allocation3], 1
    %s362 = scalar_lea.sflag [#allocation3], 1
    %363 = vsyncpa %s362, 1
    %364 = vsyncpa [#allocation6], 1
    %365 = vsyncpa [#allocation4], 1
    %s366 = scalar_lea.sflag [#allocation4], 1
    %367 = vsyncpa %s366, 1

</llo_original>
